<compile_context>
chip_gen: v7x
topology: tpu7x:2x2x1
jax: 0.10.0
libtpu: 0.0.40
codegen_flags: <defaults>
</compile_context>

<pallas_src>
import jax
import jax.numpy as jnp
from jax.experimental import pallas as pl
from jax.experimental.pallas import tpu as pltpu

_GELU_COEFF = 0.0044715            # exactly as in the reference forward()
_SQRT_2_OVER_PI = 0.7978845608028654  # sqrt(2 / pi)


def _gelu_kernel(x_ref, o_ref):
    x = x_ref[...]
    xf = x.astype(jnp.float32)
    # TODO(synk): on v7x with bf16 activations the EUP tanh could be done in
    # bf16 to avoid becoming the binding slot; f32 kept here for accuracy.
    inner = _SQRT_2_OVER_PI * (xf + _GELU_COEFF * xf * xf * xf)
    y = 0.5 * xf * (1.0 + jnp.tanh(inner))
    o_ref[...] = y.astype(o_ref.dtype)


def _choose_lane(n, last_dim):
    """Pick a big lane-dense width that exactly divides the element count."""
    for c in (8192, 4096, 2048, 1024, 512, 256, 128):
        if n % c == 0:
            return c
    # Fallback: the original trailing dim always divides n (may be lane-masked,
    # but still correct).
    return max(int(last_dim), 1)


def gelu_pallas(x, *, target_block_bytes=2 * 1024 * 1024):
    """Applies the (tanh-approx) GELU of the reference module, elementwise."""
    orig_shape = x.shape
    dtype = x.dtype
    n = x.size
    if n == 0:
        return x

    last_dim = orig_shape[-1] if x.ndim >= 1 else 1
    lane = _choose_lane(n, last_dim)
    rows = n // lane
    x2d = x.reshape(rows, lane)

    itemsize = x.dtype.itemsize
    # ~2 MiB blocks; tile_rows a multiple of 32 (legal sublane tiling for
    # f32 / bf16 / int8), clamped to the full row extent for small inputs
    # (a full-extent block dim is always legal).
    tile_rows = (target_block_bytes // (lane * itemsize)) // 32 * 32
    tile_rows = max(tile_rows, 32)
    tile_rows = min(tile_rows, rows)

    grid = (pl.cdiv(rows, tile_rows),)  # ragged last block handled by Pallas

    out = pl.pallas_call(
        _gelu_kernel,
        out_shape=jax.ShapeDtypeStruct((rows, lane), dtype),
        grid_spec=pltpu.PrefetchScalarGridSpec(
            num_scalar_prefetch=0,
            grid=grid,
            in_specs=[pl.BlockSpec((tile_rows, lane), lambda i: (i, 0))],
            out_specs=pl.BlockSpec((tile_rows, lane), lambda i: (i, 0)),
        ),
        compiler_params=pltpu.CompilerParams(
            dimension_semantics=("parallel",),   # lets v7x shard across 2 TCs
            vmem_limit_bytes=32 * 1024 * 1024,   # >= 4x block, safe on all gens
        ),
    )(x2d)

    return out.reshape(orig_shape)


def gelu_ref(x):
    xf = x.astype(jnp.float32)
    y = 0.5 * xf * (1.0 + jnp.tanh(_SQRT_2_OVER_PI * (xf + _GELU_COEFF * xf ** 3)))
    return y.astype(x.dtype)


if __name__ == "__main__":
    key = jax.random.PRNGKey(0)

    # Primary check: batch=2, seq=8, hidden=128 (f32).
    x = jax.random.normal(key, (2, 8, 128), dtype=jnp.float32)
    y = gelu_pallas(x)
    jax.block_until_ready(y)
    y_ref = gelu_ref(x)
    assert y.shape == x.shape and y.dtype == x.dtype
    assert jnp.allclose(y, y_ref, atol=1e-5, rtol=1e-5)

    # Ragged-grid check (forces a partial trailing block; no jnp.pad path).
    k2 = jax.random.PRNGKey(1)
    x2 = jax.random.normal(k2, (520, 128), dtype=jnp.float32)
    y2 = gelu_pallas(x2, target_block_bytes=128 * 1024)
    jax.block_until_ready(y2)
    assert jnp.allclose(y2, gelu_ref(x2), atol=1e-5, rtol=1e-5)

    # bf16 check (dtype-aware sublane tiling, compute in f32 inside the kernel).
    k3 = jax.random.PRNGKey(2)
    x3 = jax.random.normal(k3, (4, 16, 256), dtype=jnp.bfloat16)
    y3 = gelu_pallas(x3)
    jax.block_until_ready(y3)
    assert y3.dtype == jnp.bfloat16
    assert jnp.allclose(y3.astype(jnp.float32),
                        gelu_ref(x3).astype(jnp.float32), atol=2e-2, rtol=2e-2)

    print("KERNEL_OK")
</pallas_src>

<mosaic_0001>
module attributes {stable_mosaic.version = 11 : i64} {
  func.func @_gelu_kernel(%arg0: i32, %arg1: memref<1x2048xf32, #tpu.memory_space<vmem>>, %arg2: memref<1x2048xf32, #tpu.memory_space<vmem>>) attributes {dimension_semantics = [#tpu.dimension_semantics<parallel>], iteration_bounds = array<i64: 1>, scalar_prefetch = 0 : i64, scratch_operands = 0 : i64, tpu.core_type = #tpu.core_type<tc>, window_params = [{transform_indices = @transform_0, window_bounds = array<i64: 1, 2048>}, {transform_indices = @transform_1, window_bounds = array<i64: 1, 2048>}]} {
    %c0 = arith.constant 0 : index
    %c0_0 = arith.constant 0 : index
    %0 = vector.load %arg1[%c0, %c0_0] : memref<1x2048xf32, #tpu.memory_space<vmem>>, vector<1x2048xf32>
    %cst = arith.constant 4.471500e-03 : f32
    %1 = vector.broadcast %cst : f32 to vector<1x2048xf32>
    %2 = arith.mulf %1, %0 : vector<1x2048xf32>
    %3 = arith.mulf %2, %0 : vector<1x2048xf32>
    %4 = arith.mulf %3, %0 : vector<1x2048xf32>
    %5 = arith.addf %0, %4 : vector<1x2048xf32>
    %cst_1 = arith.constant 0.797884583 : f32
    %6 = vector.broadcast %cst_1 : f32 to vector<1x2048xf32>
    %7 = arith.mulf %6, %5 : vector<1x2048xf32>
    %cst_2 = arith.constant 5.000000e-01 : f32
    %8 = vector.broadcast %cst_2 : f32 to vector<1x2048xf32>
    %9 = arith.mulf %8, %0 : vector<1x2048xf32>
    %10 = math.tanh %7 : vector<1x2048xf32>
    %cst_3 = arith.constant 1.000000e+00 : f32
    %11 = vector.broadcast %cst_3 : f32 to vector<1x2048xf32>
    %12 = arith.addf %11, %10 : vector<1x2048xf32>
    %13 = arith.mulf %9, %12 : vector<1x2048xf32>
    %c0_4 = arith.constant 0 : index
    %c0_5 = arith.constant 0 : index
    %14 = vector.load %arg2[%c0_4, %c0_5] : memref<1x2048xf32, #tpu.memory_space<vmem>>, vector<1x2048xf32>
    tpu.vector_store %arg2[%c0_4, %c0_5], %13 {strides = array<i32>} : memref<1x2048xf32, #tpu.memory_space<vmem>>, vector<1x2048xf32>,
    return
  }
  func.func @transform_0(%arg0: i32) -> (i32, i32) {
    %c0_i32 = arith.constant 0 : i32
    %c0_i32_0 = arith.constant 0 : i32
    return %arg0, %c0_i32 : i32, i32
  }
  func.func @transform_1(%arg0: i32) -> (i32, i32) {
    %c0_i32 = arith.constant 0 : i32
    %c0_i32_0 = arith.constant 0 : i32
    return %arg0, %c0_i32 : i32, i32
  }
}

</mosaic_0001>

<llo_original>
// kernel: tpu_custom_call.1
$region0: #{tpu_custom_call.1}
  #allocation0 [shape = 'u32[]', space=smem, size = 0x4, offset = 0x4, fixed_abs, tag = 'smem constant byte address 0x4 - core index']
  #allocation1 [shape = 'u32[144,128]{1,0:T(1,128)}', space=vmem, size = 0x12000, scoped, tag = 'internal scratch']
  %s0 = inlined_call_operand.hbm [shape: f32[1,2048], index: 0, kind: input, shape index: {}]
  %s1 = inlined_call_operand.hbm [shape: f32[1,2048], index: 1, kind: output, shape index: {}]
  %s2 = sld [smem:[#allocation0]]
  $region18: #{tpu_custom_call.1} parent=0
    _
  %s4 = ssub.s32 1, %s2
  %s5 = scalar_select 0, %s4, %s2
  $region1: #{tpu_custom_call.1} parent=0
    #allocation2 [shape = 'u8[8192]{0}', space=vmem, size = 0x2000, scoped, tag = 'input window, operand 0, single buffered']
    #allocation3 [shape = 's32[1]{0}', space=sflag, size = 0x4, scoped, tag = 'scoped memory for tpu_custom_call.1']
    #allocation4 [shape = 's32[1]{0}', space=sflag, size = 0x4, scoped, tag = 'scoped memory for tpu_custom_call.1']
    #allocation5 [shape = 'u8[8192]{0}', space=vmem, size = 0x2000, scoped, tag = 'output window, operand 0, single buffered']
    %6 = vsyncpa [#allocation3], 0
    %7 = vsyncpa [#allocation4], 0
    // Predicated region
    $region2: #{tpu_custom_call.1} parent=1 // pred_check
      _
    $region3: #{tpu_custom_call.1} parent=1 // pred_check_branch
      %9 = sbr.rel (0) target = $region5
    $region4: #{tpu_custom_call.1} parent=1 // pred_region
      %s11 = ssub.s32 256, 256
      %12 = vsyncadd [#allocation3], %s11
      %s14 = sshll.u32 [#allocation2], 4
      %s15 = int_to_ptr.vmem [resolvable:$true] %s14
      %17 = dma.hbm_to_vmem [thread:$0]  %s0, 256, %s15, [#allocation3]
    $region5: #{tpu_custom_call.1} parent=1 // pred_fallthru
      _
    // Predicated region
    $region6: #{tpu_custom_call.1} parent=1 // pred_check
      _
    $region7: #{tpu_custom_call.1} parent=1 // pred_check_branch
      %19 = sbr.rel (0) target = $region9
    $region8: #{tpu_custom_call.1} parent=1 // pred_region
      %20 = dma.done [#allocation3], 256
    $region9: #{tpu_custom_call.1} parent=1 // pred_fallthru
      _
    %v21 = vld [vmem:[#allocation2] sm:$0xff]
    %v22 = vld [vmem:[#allocation2 + $0x8] sm:$0xff]
    %v23 = vmul.f32 %v21, 0.0044715
    %v24 = vmul.f32 %v22, 0.0044715
    %v25 = vmul.f32 %v23, %v21
    %v26 = vmul.f32 %v24, %v22
    %v27 = vmul.f32 %v25, %v21
    %v28 = vmul.f32 %v26, %v22
    %v29 = vadd.f32 %v21, %v27
    %v30 = vadd.f32 %v22, %v28
    %v31 = vmul.f32 %v29, 0.7978846
    %v32 = vmul.f32 %v30, 0.7978846
    %v33 = vmul.f32 %v21, 0.5
    %v34 = vmul.f32 %v22, 0.5
    %v35 = vtanh.pop %v31
    %v36 = vtanh.pop %v32
    %v37 = vadd.f32 %v35, 1.0
    %v38 = vadd.f32 %v36, 1.0
    %v39 = vmul.f32 %v33, %v37
    %v40 = vmul.f32 %v34, %v38
    %41 = vst [vmem:[#allocation5] sm:$0xff] %v39
    %42 = vst [vmem:[#allocation5 + $0x8] sm:$0xff] %v40
    // Predicated region
    $region10: #{tpu_custom_call.1} parent=1 // pred_check
      _
    $region11: #{tpu_custom_call.1} parent=1 // pred_check_branch
      %44 = sbr.rel (0) target = $region13
    $region12: #{tpu_custom_call.1} parent=1 // pred_region
      %s46 = ssub.s32 256, 256
      %47 = vsyncadd [#allocation4], %s46
      %s49 = sshll.u32 [#allocation5], 4
      %s50 = int_to_ptr.vmem [resolvable:$true] %s49
      %52 = dma.vmem_to_hbm [thread:$0]  %s50, 256, %s1, [#allocation4]
    $region13: #{tpu_custom_call.1} parent=1 // pred_fallthru
      _
    // Predicated region
    $region14: #{tpu_custom_call.1} parent=1 // pred_check
      _
    $region15: #{tpu_custom_call.1} parent=1 // pred_check_branch
      %54 = sbr.rel (0) target = $region17
    $region16: #{tpu_custom_call.1} parent=1 // pred_region
      %55 = dma.done [#allocation4], 256
    $region17: #{tpu_custom_call.1} parent=1 // pred_fallthru
      _
    %56 = vsyncpa [#allocation3], 1
    %57 = vsyncpa [#allocation4], 1

</llo_original>
